<compile_context>
chip_gen: v5e
topology: v5e:2x2
jax: 0.10.0
libtpu: 0.0.40
codegen_flags: <defaults>
</compile_context>

<pallas_src>
import functools

import jax
import jax.numpy as jnp
from jax.experimental import pallas as pl
from jax.experimental.pallas import tpu as pltpu

_LANES = 128
_VMEM_LIMIT_BYTES = 32 * 1024 * 1024   # safe on v5e (128 MiB), v6e (128), v7x (64)
_WORKING_SET_BUDGET = 20 * 1024 * 1024  # leave headroom under the scoped limit


def _round_up(x: int, m: int) -> int:
    return (x + m - 1) // m * m


def _gaussian_code_kernel(h_ref, w_ref, b_ref, code_ref, kld_ref, *, c_pad, c):
    # In-kernel bf16 cast (VPU) -> single fused MXU matmul, f32 accumulation.
    h = h_ref[...].astype(jnp.bfloat16)
    y = jnp.dot(h, w_ref[...], preferred_element_type=jnp.float32) + b_ref[...]

    mu = y[:, :c_pad]          # (TB, C_pad) -- 128-aligned slice (free)
    logvar = y[:, c_pad:]      # (TB, C_pad)

    # code = dist.mean = mu  (eval mode); store only the C useful lanes.
    code_ref[...] = mu[:, :c].astype(code_ref.dtype)

    # Analytic KL( N(mu, exp(0.5*logvar)) || N(0,1) ); exp -> EUP, sum -> XLU.
    # Zero-padded columns (mu = 0, logvar = 0) contribute exactly 0.
    kld = 0.5 * (jnp.exp(logvar) + mu * mu - 1.0 - logvar)
    kld_ref[...] = jnp.sum(kld, axis=-1, keepdims=True)   # (TB, 1)


def prepare_params(w_mu, b_mu, w_lv, b_lv):
    """One-time parameter prep (hoisted out of the per-call path).

    PyTorch Linear layout: w_*: (C, D_in), b_*: (C,).
    Returns (w_fused: (D_in, 2*C_pad) bf16, b_fused: (1, 2*C_pad) f32, C).
    """
    C, D_in = w_mu.shape
    c_pad = _round_up(C, _LANES)
    w = jnp.zeros((D_in, 2 * c_pad), jnp.float32)
    w = w.at[:, :C].set(jnp.asarray(w_mu, jnp.float32).T)
    w = w.at[:, c_pad:c_pad + C].set(jnp.asarray(w_lv, jnp.float32).T)
    b = jnp.zeros((1, 2 * c_pad), jnp.float32)
    b = b.at[0, :C].set(jnp.asarray(b_mu, jnp.float32))
    b = b.at[0, c_pad:c_pad + C].set(jnp.asarray(b_lv, jnp.float32))
    return w.astype(jnp.bfloat16), b, C


def _choose_batch_tile(B, D_in, c_pad, code_dim):
    """Largest batch tile (multiple of 8, <= 1024) fitting the VMEM budget,
    with a >= 2-step grid when B allows so both v7x TensorCores are used."""
    # Per-row pipelined bytes: double-buffered f32 h tile + double-buffered
    # f32 code (C lanes) + f32 kld (1 lane) outputs.
    per_row = 2 * D_in * 4 + 2 * code_dim * 4 + 2 * 4
    # Resident weight + bias (conservatively counted double-buffered).
    fixed = 2 * (D_in * 2 * c_pad * 2) + 2 * (2 * c_pad * 4)
    tb_max = max(8, (_WORKING_SET_BUDGET - fixed) // per_row)
    tb = min(1024, _round_up(B, 8), (tb_max // 8) * 8)
    tb = max(8, tb)
    # v7x megacore: make the "parallel" batch axis have >= 2 grid steps.
    if B >= 16 and pl.cdiv(B, tb) < 2:
        tb = max(8, _round_up(pl.cdiv(B, 2), 8))
    return tb


def gaussian_code_generator(h, w_fused, b_fused, code_dim):
    """h: (B, D_in) f32.  Returns (code: (B, C) f32, kld: (B,) f32)."""
    B, D_in = h.shape
    two_c_pad = w_fused.shape[1]
    c_pad = two_c_pad // 2

    tb = _choose_batch_tile(B, D_in, c_pad, code_dim)
    grid = (pl.cdiv(B, tb),)

    kernel = functools.partial(_gaussian_code_kernel, c_pad=c_pad, c=code_dim)

    flops = 2 * B * D_in * two_c_pad + 6 * B * two_c_pad
    bytes_accessed = (B * D_in * 4                     # h (f32, read once)
                      + D_in * two_c_pad * 2           # fused W (bf16)
                      + two_c_pad * 4                  # bias
                      + B * code_dim * 4               # code out
                      + B * 4)                         # kld out

    code, kld = pl.pallas_call(
        kernel,
        out_shape=(
            jax.ShapeDtypeStruct((B, code_dim), jnp.float32),
            jax.ShapeDtypeStruct((B, 1), jnp.float32),
        ),
        grid=grid,
        in_specs=[
            pl.BlockSpec((tb, D_in), lambda i: (i, 0)),           # h tile (f32)
            pl.BlockSpec((D_in, two_c_pad), lambda i: (0, 0)),    # resident W
            pl.BlockSpec((1, two_c_pad), lambda i: (0, 0)),       # resident b
        ],
        out_specs=(
            pl.BlockSpec((tb, code_dim), lambda i: (i, 0)),       # code (B, C)
            pl.BlockSpec((tb, 1), lambda i: (i, 0)),              # kld  (B, 1)
        ),
        compiler_params=pltpu.CompilerParams(
            dimension_semantics=("parallel",),
            vmem_limit_bytes=_VMEM_LIMIT_BYTES),
        cost_estimate=pl.CostEstimate(
            flops=flops,
            transcendentals=B * c_pad,
            bytes_accessed=bytes_accessed),
    )(h, w_fused, b_fused)

    return code, kld[:, 0]


if __name__ == "__main__":
    # Small deterministic problem: batch=8, input_dim=32, code_dim=16.
    B, D_IN, CODE_DIM = 8, 32, 16
    key = jax.random.PRNGKey(0)
    k_h, k_wmu, k_bmu, k_wlv, k_blv = jax.random.split(key, 5)

    h = jax.random.normal(k_h, (B, D_IN), dtype=jnp.float32)
    # Parameters in PyTorch Linear layout: (out, in) weights, (out,) biases.
    w_mu = 0.1 * jax.random.normal(k_wmu, (CODE_DIM, D_IN), dtype=jnp.float32)
    b_mu = 0.1 * jax.random.normal(k_bmu, (CODE_DIM,), dtype=jnp.float32)
    w_lv = 0.1 * jax.random.normal(k_wlv, (CODE_DIM, D_IN), dtype=jnp.float32)
    b_lv = 0.1 * jax.random.normal(k_blv, (CODE_DIM,), dtype=jnp.float32)

    # One-time parameter prep (fuse + transpose + pad + bf16 cast).
    w_fused, b_fused, code_dim = prepare_params(w_mu, b_mu, w_lv, b_lv)

    code, kld = gaussian_code_generator(h, w_fused, b_fused, code_dim)
    jax.block_until_ready((code, kld))

    # Reference: same math with bf16-rounded matmul operands (the kernel casts
    # h / W to bf16 for the MXU, accumulates and post-processes in f32).
    hb = h.astype(jnp.bfloat16).astype(jnp.float32)
    wmub = w_mu.astype(jnp.bfloat16).astype(jnp.float32)
    wlvb = w_lv.astype(jnp.bfloat16).astype(jnp.float32)
    mu_ref = hb @ wmub.T + b_mu
    lv_ref = hb @ wlvb.T + b_lv
    kld_ref = (0.5 * (jnp.exp(lv_ref) + mu_ref**2 - 1.0 - lv_ref)).sum(axis=1)

    assert code.shape == (B, CODE_DIM) and kld.shape == (B,)
    assert jnp.allclose(code, mu_ref, atol=2e-2, rtol=2e-2)
    assert jnp.allclose(kld, kld_ref, atol=2e-2, rtol=2e-2)

    print("KERNEL_OK")
</pallas_src>

<mosaic_0001>
module attributes {stable_mosaic.version = 11 : i64} {
  func.func @_gaussian_code_kernel(%arg0: i32, %arg1: memref<8x32xf32, #tpu.memory_space<vmem>>, %arg2: memref<32x256xbf16, #tpu.memory_space<vmem>>, %arg3: memref<1x256xf32, #tpu.memory_space<vmem>>, %arg4: memref<8x16xf32, #tpu.memory_space<vmem>>, %arg5: memref<8x1xf32, #tpu.memory_space<vmem>>) attributes {dimension_semantics = [#tpu.dimension_semantics<parallel>], iteration_bounds = array<i64: 1>, scalar_prefetch = 0 : i64, scratch_operands = 0 : i64, tpu.core_type = #tpu.core_type<tc>, window_params = [{transform_indices = @transform_0, window_bounds = array<i64: 8, 32>}, {pipeline_mode = #tpu.pipeline_mode<synchronous>, transform_indices = @transform_1, window_bounds = array<i64: 32, 256>}, {pipeline_mode = #tpu.pipeline_mode<synchronous>, transform_indices = @transform_2, window_bounds = array<i64: 1, 256>}, {transform_indices = @transform_3, window_bounds = array<i64: 8, 16>}, {transform_indices = @transform_4, window_bounds = array<i64: 8, 1>}]} {
    %c0 = arith.constant 0 : index
    %c0_0 = arith.constant 0 : index
    %0 = vector.load %arg1[%c0, %c0_0] : memref<8x32xf32, #tpu.memory_space<vmem>>, vector<8x32xf32>
    %1 = arith.truncf %0 : vector<8x32xf32> to vector<8x32xbf16>
    %c0_1 = arith.constant 0 : index
    %c0_2 = arith.constant 0 : index
    %2 = vector.load %arg2[%c0_1, %c0_2] : memref<32x256xbf16, #tpu.memory_space<vmem>>, vector<32x256xbf16>
    %cst = arith.constant dense<0.000000e+00> : vector<8x256xf32>
    %3 = tpu.matmul %1, %2, %cst {dimension_numbers = #tpu.dot_dimension_numbers<[1], [0], [0], [1], [0, 0, 1, 1], [], []>} : vector<8x32xbf16>, vector<32x256xbf16>, vector<8x256xf32> -> vector<8x256xf32>
    %c0_3 = arith.constant 0 : index
    %c0_4 = arith.constant 0 : index
    %4 = vector.load %arg3[%c0_3, %c0_4] : memref<1x256xf32, #tpu.memory_space<vmem>>, vector<1x256xf32>
    %5 = vector.broadcast %4 : vector<1x256xf32> to vector<8x256xf32>
    %6 = arith.addf %3, %5 : vector<8x256xf32>
    %7 = vector.extract_strided_slice %6 {offsets = [0, 0], sizes = [8, 128], strides = [1, 1]} : vector<8x256xf32> to vector<8x128xf32>
    %8 = vector.extract_strided_slice %6 {offsets = [0, 128], sizes = [8, 128], strides = [1, 1]} : vector<8x256xf32> to vector<8x128xf32>
    %9 = vector.extract_strided_slice %7 {offsets = [0, 0], sizes = [8, 16], strides = [1, 1]} : vector<8x128xf32> to vector<8x16xf32>
    %c0_5 = arith.constant 0 : index
    %c0_6 = arith.constant 0 : index
    %10 = vector.load %arg4[%c0_5, %c0_6] : memref<8x16xf32, #tpu.memory_space<vmem>>, vector<8x16xf32>
    tpu.vector_store %arg4[%c0_5, %c0_6], %9 {strides = array<i32>} : memref<8x16xf32, #tpu.memory_space<vmem>>, vector<8x16xf32>,
    %11 = math.exp %8 : vector<8x128xf32>
    %12 = arith.mulf %7, %7 : vector<8x128xf32>
    %13 = arith.addf %11, %12 : vector<8x128xf32>
    %cst_7 = arith.constant 1.000000e+00 : f32
    %14 = vector.broadcast %cst_7 : f32 to vector<8x128xf32>
    %15 = arith.subf %13, %14 : vector<8x128xf32>
    %16 = arith.subf %15, %8 : vector<8x128xf32>
    %cst_8 = arith.constant 5.000000e-01 : f32
    %17 = vector.broadcast %cst_8 : f32 to vector<8x128xf32>
    %18 = arith.mulf %17, %16 : vector<8x128xf32>
    %cst_9 = arith.constant dense<0.000000e+00> : vector<8xf32>
    %19 = vector.multi_reduction <add>, %18, %cst_9 [1] : vector<8x128xf32> to vector<8xf32>
    %20 = vector.shape_cast %19 : vector<8xf32> to vector<8x1xf32>
    %c0_10 = arith.constant 0 : index
    %c0_11 = arith.constant 0 : index
    %21 = vector.load %arg5[%c0_10, %c0_11] : memref<8x1xf32, #tpu.memory_space<vmem>>, vector<8x1xf32>
    tpu.vector_store %arg5[%c0_10, %c0_11], %20 {strides = array<i32>} : memref<8x1xf32, #tpu.memory_space<vmem>>, vector<8x1xf32>,
    return
  }
  func.func @transform_0(%arg0: i32) -> (i32, i32) {
    %c0_i32 = arith.constant 0 : i32
    %c0_i32_0 = arith.constant 0 : i32
    return %arg0, %c0_i32 : i32, i32
  }
  func.func @transform_1(%arg0: i32) -> (i32, i32) {
    %c0_i32 = arith.constant 0 : i32
    %c0_i32_0 = arith.constant 0 : i32
    %c0_i32_1 = arith.constant 0 : i32
    return %c0_i32, %c0_i32_0 : i32, i32
  }
  func.func @transform_2(%arg0: i32) -> (i32, i32) {
    %c0_i32 = arith.constant 0 : i32
    %c0_i32_0 = arith.constant 0 : i32
    %c0_i32_1 = arith.constant 0 : i32
    return %c0_i32, %c0_i32_0 : i32, i32
  }
  func.func @transform_3(%arg0: i32) -> (i32, i32) {
    %c0_i32 = arith.constant 0 : i32
    %c0_i32_0 = arith.constant 0 : i32
    return %arg0, %c0_i32 : i32, i32
  }
  func.func @transform_4(%arg0: i32) -> (i32, i32) {
    %c0_i32 = arith.constant 0 : i32
    %c0_i32_0 = arith.constant 0 : i32
    return %arg0, %c0_i32 : i32, i32
  }
}

</mosaic_0001>

<llo_original>
// kernel: tpu_custom_call.1
$region0: #{tpu_custom_call.1}
  #allocation0 [shape = 'u32[]', space=smem, size = 0x4, offset = 0x4, fixed_abs, tag = 'smem constant byte address 0x4 - core index']
  #allocation1 [shape = 'u32[72,128]{1,0:T(1,128)}', space=vmem, size = 0x9000, scoped, tag = 'internal scratch']
  %s0 = inlined_call_operand.hbm [shape: f32[8,32], index: 0, kind: input, shape index: {}]
  %s1 = inlined_call_operand.hbm [shape: bf16[32,256], index: 1, kind: input, shape index: {}]
  %s2 = inlined_call_operand.hbm [shape: f32[1,256], index: 2, kind: input, shape index: {}]
  %s3 = inlined_call_operand.hbm [shape: f32[8,16], index: 3, kind: output, shape index: {0}]
  %s4 = inlined_call_operand.vmem [shape: f32[8,1], index: 4, kind: output, shape index: {1}]
  %5 = xla_tuple %s3, %s4
  %s6 = sld [smem:[#allocation0]]
  $region42: #{tpu_custom_call.1} parent=0
    _
  %s8 = ssub.s32 1, %s6
  %s9 = scalar_select 0, %s8, %s6
  $region1: #{tpu_custom_call.1} parent=0
    #allocation2 [shape = 'u8[4096]{0}', space=vmem, size = 0x1000, scoped, tag = 'input window, operand 0, single buffered']
    #allocation3 [shape = 's32[1]{0}', space=sflag, size = 0x4, scoped, tag = 'scoped memory for tpu_custom_call.1']
    #allocation4 [shape = 's32[1]{0}', space=sflag, size = 0x4, scoped, tag = 'scoped memory for tpu_custom_call.1']
    #allocation5 [shape = 'u8[16384]{0}', space=vmem, size = 0x4000, scoped, tag = 'input window, operand 1, single buffered']
    #allocation6 [shape = 's32[1]{0}', space=sflag, size = 0x4, scoped, tag = 'scoped memory for tpu_custom_call.1']
    #allocation7 [shape = 'u8[1024]{0}', space=vmem, size = 0x400, scoped, tag = 'input window, operand 2, single buffered']
    #allocation8 [shape = 'u8[4096]{0}', space=vmem, size = 0x1000, scoped, tag = 'output window, operand 0, single buffered']
    %10 = vsyncpa [#allocation3], 0
    %11 = vsyncpa [#allocation6], 0
    %12 = vsyncpa [#allocation4], 0
    // Predicated region
    $region2: #{tpu_custom_call.1} parent=1 // pred_check
      _
    $region3: #{tpu_custom_call.1} parent=1 // pred_check_branch
      %14 = sbr.rel (0) target = $region5
    $region4: #{tpu_custom_call.1} parent=1 // pred_region
      %16 = vsyncadd [#allocation3], 0
      %s18 = sshll.u32 %s0, 4
      %s19 = int_to_ptr.hbm [resolvable:$true] %s18
      %s20 = sshll.u32 [#allocation2], 4
      %s21 = int_to_ptr.vmem [resolvable:$true] %s20
      %23 = dma.hbm_to_vmem [thread:$0]  %s19, 128, %s21, [#allocation3]
    $region5: #{tpu_custom_call.1} parent=1 // pred_fallthru
      _
    // Predicated region
    $region6: #{tpu_custom_call.1} parent=1 // pred_check
      _
    $region7: #{tpu_custom_call.1} parent=1 // pred_check_branch
      %25 = sbr.rel (0) target = $region9
    $region8: #{tpu_custom_call.1} parent=1 // pred_region
      %27 = vsyncadd [#allocation6], 0
      %s28 = sshll.u32 %s1, 4
      %s29 = int_to_ptr.hbm [resolvable:$true] %s28
      %s30 = sshll.u32 [#allocation5], 4
      %s31 = int_to_ptr.vmem [resolvable:$true] %s30
      %36 = dma.hbm_to_vmem [thread:$0]  %s29, 512, %s31, [#allocation6], 128, 128, 8
    $region9: #{tpu_custom_call.1} parent=1 // pred_fallthru
      _
    // Predicated region
    $region10: #{tpu_custom_call.1} parent=1 // pred_check
      _
    $region11: #{tpu_custom_call.1} parent=1 // pred_check_branch
      %38 = sbr.rel (0) target = $region13
    $region12: #{tpu_custom_call.1} parent=1 // pred_region
      %40 = vsyncadd [#allocation6], 0
      %s42 = sshll.u32 %s2, 4
      %s43 = int_to_ptr.hbm [resolvable:$true] %s42
      %s44 = sshll.u32 [#allocation7], 4
      %s45 = int_to_ptr.vmem [resolvable:$true] %s44
      %47 = dma.hbm_to_vmem [thread:$0]  %s43, 32, %s45, [#allocation6]
    $region13: #{tpu_custom_call.1} parent=1 // pred_fallthru
      _
    // Predicated region
    $region14: #{tpu_custom_call.1} parent=1 // pred_check
      _
    $region15: #{tpu_custom_call.1} parent=1 // pred_check_branch
      %49 = sbr.rel (0) target = $region17
    $region16: #{tpu_custom_call.1} parent=1 // pred_region
      %51 = dma.done [#allocation3], 128
    $region17: #{tpu_custom_call.1} parent=1 // pred_fallthru
      _
    // Predicated region
    $region18: #{tpu_custom_call.1} parent=1 // pred_check
      _
    $region19: #{tpu_custom_call.1} parent=1 // pred_check_branch
      %53 = sbr.rel (0) target = $region21
    $region20: #{tpu_custom_call.1} parent=1 // pred_region
      %55 = dma.done [#allocation6], 512
    $region21: #{tpu_custom_call.1} parent=1 // pred_fallthru
      _
    // Predicated region
    $region22: #{tpu_custom_call.1} parent=1 // pred_check
      _
    $region23: #{tpu_custom_call.1} parent=1 // pred_check_branch
      %57 = sbr.rel (0) target = $region25
    $region24: #{tpu_custom_call.1} parent=1 // pred_region
      %59 = dma.done [#allocation6], 32
    $region25: #{tpu_custom_call.1} parent=1 // pred_fallthru
      _
    %v61 = vld [vmem:[#allocation2] sm:$0xff]
    %v62 = vpack.c.bf16 %v61, %v61
    %v63 = vld [vmem:[#allocation5] sm:$0xff]
    %v64 = vld [vmem:[#allocation5 + $0x8] sm:$0xff]
    %v65 = vld [vmem:[#allocation5 + $0x10] sm:$0xff]
    %v66 = vld [vmem:[#allocation5 + $0x18] sm:$0xff]
    %v67 = vld [vmem:[#allocation7] sm:$0x3]
    %v69 = vperm.slane %v67, 0
    %v70 = vperm.slane %v67, 1
    %v77 = vunpack.c.l.b16 %v63
    %v78 = vunpack.c.h.b16 %v63
    %v79 = vunpack.c.l.b16 %v64
    %v80 = vunpack.c.h.b16 %v64
    %v81 = vunpack.c.l.b16 %v65
    %v82 = vunpack.c.h.b16 %v65
    %v83 = vunpack.c.l.b16 %v66
    %v84 = vunpack.c.h.b16 %v66
    %v85 = vpack.c.b16 %v79, %v77
    %v86 = vpack.c.b16 %v80, %v78
    %v87 = vpack.c.b16 %v83, %v81
    %v88 = vpack.c.b16 %v84, %v82
    %vm93 = vcmask 261120
    %v95 = vsel %vm93, %v62, 0
    %97 = vmatpush.bf16.msra.mxu0 0
    %98 = vmatpush.bf16.msra.mxu0 0
    %99 = vmatpush.bf16.msra.mxu0 0
    %100 = vmatpush.bf16.msra.mxu0 0
    %101 = vmatpush.bf16.msra.mxu0 0
    %102 = vmatpush.bf16.msra.mxu0 0
    %103 = vmatpush.bf16.msra.mxu0 %v87
    %104 = vmatpush.bf16.msra.mxu0 %v85
    %105 = vmatmul.bf16.gmra.mxu0 %v95
    %v106 = vpop.f32.mrf.mxu0
    %v107 = vadd.f32 %v69, %v106
    %v108 = vpop.f32.mrf.mxu0
    %109 = vdwg.mxu0
    %110 = vmatpush.bf16.msra.mxu0 0
    %111 = vmatpush.bf16.msra.mxu0 0
    %112 = vmatpush.bf16.msra.mxu0 0
    %113 = vmatpush.bf16.msra.mxu0 0
    %114 = vmatpush.bf16.msra.mxu0 0
    %115 = vmatpush.bf16.msra.mxu0 0
    %116 = vmatpush.bf16.msra.mxu0 %v88
    %117 = vmatpush.bf16.msra.mxu0 %v86
    %118 = vmatmul.bf16.gmra.mxu0 %v95
    %v119 = vpop.f32.mrf.mxu0
    %v120 = vadd.f32 %v70, %v119
    %v121 = vpop.f32.mrf.mxu0
    %122 = vdwg.mxu0
    %vm123 = vcmask 130048
    %124 = vst.msk [vmem:[#allocation8] sm:$0xff] %vm123, %v107
    %v125 = vmul.f32 %v120, 1.442695
    %v126 = vpow.pop %v125
    %v127 = vmul.f32 %v107, %v107
    %v128 = vadd.f32 %v126, %v127
    %v129 = vsub.f32 %v128, 1.0
    %v130 = vsub.f32 %v129, %v120
    %v131 = vmul.f32 %v130, 0.5
    %132 = vadd.xlane.f32.xlu0 %v131
    %v133 = vpop.xlane.xlu0 %132
    %vm134 = vcmask 7168
    %135 = vst.msk [vmem:[%s4] sm:$0xff] %vm134, %v133
    // Predicated region
    $region26: #{tpu_custom_call.1} parent=1 // pred_check
      _
    $region27: #{tpu_custom_call.1} parent=1 // pred_check_branch
      %137 = sbr.rel (0) target = $region29
    $region28: #{tpu_custom_call.1} parent=1 // pred_region
      %139 = vsyncadd [#allocation4], 0
      %s141 = sshll.u32 [#allocation8], 4
      %s142 = int_to_ptr.vmem [resolvable:$true] %s141
      %s143 = sshll.u32 %s3, 4
      %s144 = int_to_ptr.hbm [resolvable:$true] %s143
      %146 = dma.vmem_to_hbm [thread:$0]  %s142, 128, %s144, [#allocation4]
    $region29: #{tpu_custom_call.1} parent=1 // pred_fallthru
      _
    // Predicated region
    $region30: #{tpu_custom_call.1} parent=1 // pred_check
      _
    $region31: #{tpu_custom_call.1} parent=1 // pred_check_branch
      %148 = sbr.rel (0) target = $region33
    $region32: #{tpu_custom_call.1} parent=1 // pred_region
      _
    $region33: #{tpu_custom_call.1} parent=1 // pred_fallthru
      _
    // Predicated region
    $region34: #{tpu_custom_call.1} parent=1 // pred_check
      _
    $region35: #{tpu_custom_call.1} parent=1 // pred_check_branch
      %150 = sbr.rel (0) target = $region37
    $region36: #{tpu_custom_call.1} parent=1 // pred_region
      %152 = dma.done [#allocation4], 128
    $region37: #{tpu_custom_call.1} parent=1 // pred_fallthru
      _
    // Predicated region
    $region38: #{tpu_custom_call.1} parent=1 // pred_check
      _
    $region39: #{tpu_custom_call.1} parent=1 // pred_check_branch
      %154 = sbr.rel (0) target = $region41
    $region40: #{tpu_custom_call.1} parent=1 // pred_region
      _
    $region41: #{tpu_custom_call.1} parent=1 // pred_fallthru
      _
    %155 = vsyncpa [#allocation3], 1
    %156 = vsyncpa [#allocation6], 1
    %157 = vsyncpa [#allocation4], 1

</llo_original>
